<compile_context>
chip_gen: v7x
topology: tpu7x:2x2x1
jax: 0.10.0
libtpu: 0.0.40
codegen_flags: <defaults>
</compile_context>

<pallas_src>
import functools

import jax
import jax.numpy as jnp
from jax.experimental import pallas as pl
from jax.experimental.pallas import tpu as pltpu


def _hypernet_kernel(z_ref, w_ref, o_ref):
    # z_ref: (1, Zp)   w_ref: (Zp, TN)   o_ref: (1, TN)
    # Biases are already folded into W as an extra row (z carries a matching 1.0).
    o_ref[...] = jnp.dot(
        z_ref[...], w_ref[...], preferred_element_type=jnp.float32
    ).astype(o_ref.dtype)


def _choose_tiling(n_total, z_rows_pad, itemsize, *,
                   vmem_weight_budget=32 * 1024 * 1024,
                   split_threshold_cols=8192):
    """Pick (tile_n, num_tiles, n_pad).

    * tile_n is as wide as the double-buffered weight-slab budget allows
      (no artificial small cap) -> fewest grid steps, long contiguous DMA bursts.
    * For large N we force >= 2 tiles so the parallel column axis can shard
      across both v7x TensorCores.
    * tile_n is derived from the tile count, bounding column-padding waste.
    """
    n_128 = pl.cdiv(n_total, 128) * 128
    # Widest 128-aligned tile whose double-buffered weight slab fits the budget.
    budget_cols = max(
        128, (vmem_weight_budget // (2 * z_rows_pad * itemsize)) // 128 * 128
    )
    min_tiles = 2 if n_128 > split_threshold_cols else 1
    num_tiles = max(min_tiles, pl.cdiv(n_128, budget_cols))
    tile_n = pl.cdiv(pl.cdiv(n_128, num_tiles), 128) * 128
    n_pad = num_tiles * tile_n
    return tile_n, num_tiles, n_pad


def prepare_params(params, *, z_dim, kernel_size, in_size, out_size,
                   weight_dtype=jnp.float32,
                   vmem_weight_budget=32 * 1024 * 1024):
    """One-time fusion/padding of the six parameter tensors (call once at init).

    Fuses w1/w_bn1/w_bn2 column-wise, folds b1/b_bn1/b_bn2 in as an extra weight
    row, pads rows to the dtype's sublane multiple and columns to the tiling.
    Use weight_dtype=jnp.bfloat16 in production to halve streamed HBM bytes.
    """
    w1, b1, w_bn1, b_bn1, w_bn2, b_bn2 = params
    f_size = in_size * out_size * kernel_size * kernel_size
    n_total = f_size + 2 * out_size

    itemsize = jnp.dtype(weight_dtype).itemsize
    row_align = 8 * (4 // itemsize)          # 8 rows f32, 16 rows bf16 (sublane packing)
    z_rows = z_dim + 1                       # +1 bias row
    z_rows_pad = pl.cdiv(z_rows, row_align) * row_align

    tile_n, num_tiles, n_pad = _choose_tiling(
        n_total, z_rows_pad, itemsize, vmem_weight_budget=vmem_weight_budget
    )

    w_all = jnp.concatenate([w1, w_bn1, w_bn2], axis=1)        # (z_dim, N)
    b_all = jnp.concatenate([b1, b_bn1, b_bn2], axis=0)        # (N,)
    w_aug = jnp.concatenate([w_all, b_all[None, :]], axis=0)   # (z_dim + 1, N)
    w_fused = jnp.pad(w_aug, ((0, z_rows_pad - z_rows), (0, n_pad - n_total)))
    w_fused = w_fused.astype(weight_dtype)

    # VMEM actually used: double-buffered weight + output + z slabs, plus headroom.
    used = 2 * (z_rows_pad * tile_n * itemsize   # weight tiles
                + tile_n * 4                     # f32 output tiles
                + z_rows_pad * itemsize)         # z row
    vmem_limit = int(min(used + 8 * 1024 * 1024, 48 * 1024 * 1024))  # v7x-safe (<64 MiB)

    meta = dict(tile_n=tile_n, num_tiles=num_tiles,
                vmem_limit_bytes=vmem_limit)
    return w_fused, meta


@functools.partial(
    jax.jit,
    static_argnames=("z_dim", "kernel_size", "in_size", "out_size",
                     "tile_n", "num_tiles", "vmem_limit_bytes"),
)
def hypernet_fc_forward(z, w_fused, *, z_dim, kernel_size, in_size, out_size,
                        tile_n, num_tiles, vmem_limit_bytes):
    f_size = in_size * out_size * kernel_size * kernel_size
    z_rows_pad, n_pad = w_fused.shape

    # Augment z with the bias row's 1.0 and zero-pad to the padded row count.
    z_row = jnp.zeros((1, z_rows_pad), w_fused.dtype)
    z_row = z_row.at[0, :z_dim].set(z.astype(w_fused.dtype))
    z_row = z_row.at[0, z_dim].set(jnp.asarray(1.0, w_fused.dtype))

    out = pl.pallas_call(
        _hypernet_kernel,
        out_shape=jax.ShapeDtypeStruct((1, n_pad), jnp.float32),
        grid=(num_tiles,),
        in_specs=[
            pl.BlockSpec((1, z_rows_pad), lambda j: (0, 0)),
            pl.BlockSpec((z_rows_pad, tile_n), lambda j: (0, j)),
        ],
        out_specs=pl.BlockSpec((1, tile_n), lambda j: (0, j)),
        compiler_params=pltpu.CompilerParams(
            dimension_semantics=("parallel",),   # shard column tiles across v7x TCs
            vmem_limit_bytes=vmem_limit_bytes,
        ),
    )(z_row, w_fused)

    # TODO(synk): for a fully zero-copy epilogue, emit three separate pallas
    # outputs instead of slicing the flat padded buffer (~5% extra traffic here).
    flat = out[0]
    kernel = flat[:f_size].reshape(out_size, in_size, kernel_size, kernel_size)
    bn_weight = flat[f_size: f_size + out_size]
    bn_bias = flat[f_size + out_size: f_size + 2 * out_size]
    return kernel, bn_weight, bn_bias


def init_params(key, z_dim, kernel_size, in_size, out_size):
    """Deterministic init mimicking torch.fmod(torch.randn(...), 2)."""
    f_size = in_size * out_size * kernel_size * kernel_size
    ks = jax.random.split(key, 6)
    fmod2 = lambda x: jnp.fmod(x, 2.0)
    w1 = fmod2(jax.random.normal(ks[0], (z_dim, f_size), jnp.float32))
    b1 = fmod2(jax.random.normal(ks[1], (f_size,), jnp.float32))
    w_bn1 = fmod2(jax.random.normal(ks[2], (z_dim, out_size), jnp.float32))
    b_bn1 = fmod2(jax.random.normal(ks[3], (out_size,), jnp.float32))
    w_bn2 = fmod2(jax.random.normal(ks[4], (z_dim, out_size), jnp.float32))
    b_bn2 = fmod2(jax.random.normal(ks[5], (out_size,), jnp.float32))
    return (w1, b1, w_bn1, b_bn1, w_bn2, b_bn2)


if __name__ == "__main__":
    z_dim, kernel_size, in_size, out_size = 32, 3, 4, 8

    key = jax.random.PRNGKey(0)
    k_param, k_z = jax.random.split(key)
    params = init_params(k_param, z_dim, kernel_size, in_size, out_size)
    z = jax.random.normal(k_z, (z_dim,), jnp.float32)

    # Pure-JAX reference.
    w1, b1, w_bn1, b_bn1, w_bn2, b_bn2 = params
    ref_kernel = (z @ w1 + b1).reshape(out_size, in_size, kernel_size, kernel_size)
    ref_bn_w = z @ w_bn1 + b_bn1
    ref_bn_b = z @ w_bn2 + b_bn2

    # ---- f32 weights (reference-accuracy path) ----
    w_fused, meta = prepare_params(
        params, z_dim=z_dim, kernel_size=kernel_size,
        in_size=in_size, out_size=out_size, weight_dtype=jnp.float32,
    )
    kernel, bn_weight, bn_bias = hypernet_fc_forward(
        z, w_fused, z_dim=z_dim, kernel_size=kernel_size,
        in_size=in_size, out_size=out_size, **meta,
    )
    jax.block_until_ready((kernel, bn_weight, bn_bias))

    assert kernel.shape == (out_size, in_size, kernel_size, kernel_size)
    assert bn_weight.shape == (out_size,) and bn_bias.shape == (out_size,)
    assert jnp.allclose(kernel, ref_kernel, atol=1e-5, rtol=1e-5)
    assert jnp.allclose(bn_weight, ref_bn_w, atol=1e-5, rtol=1e-5)
    assert jnp.allclose(bn_bias, ref_bn_b, atol=1e-5, rtol=1e-5)

    # ---- bf16 weights (production path: half the streamed HBM bytes) ----
    w_fused_bf16, meta_bf16 = prepare_params(
        params, z_dim=z_dim, kernel_size=kernel_size,
        in_size=in_size, out_size=out_size, weight_dtype=jnp.bfloat16,
    )
    k2, bw2, bb2 = hypernet_fc_forward(
        z, w_fused_bf16, z_dim=z_dim, kernel_size=kernel_size,
        in_size=in_size, out_size=out_size, **meta_bf16,
    )
    jax.block_until_ready((k2, bw2, bb2))
    assert jnp.allclose(k2, ref_kernel, atol=0.2, rtol=0.05)
    assert jnp.allclose(bw2, ref_bn_w, atol=0.2, rtol=0.05)
    assert jnp.allclose(bb2, ref_bn_b, atol=0.2, rtol=0.05)

    print("KERNEL_OK")
</pallas_src>

<mosaic_0001>
module attributes {stable_mosaic.version = 11 : i64} {
  func.func @_hypernet_kernel(%arg0: i32, %arg1: memref<1x40xf32, #tpu.memory_space<vmem>>, %arg2: memref<40x384xf32, #tpu.memory_space<vmem>>, %arg3: memref<1x384xf32, #tpu.memory_space<vmem>>) attributes {dimension_semantics = [#tpu.dimension_semantics<parallel>], iteration_bounds = array<i64: 1>, scalar_prefetch = 0 : i64, scratch_operands = 0 : i64, tpu.core_type = #tpu.core_type<tc>, window_params = [{pipeline_mode = #tpu.pipeline_mode<synchronous>, transform_indices = @transform_0, window_bounds = array<i64: 1, 40>}, {transform_indices = @transform_1, window_bounds = array<i64: 40, 384>}, {transform_indices = @transform_2, window_bounds = array<i64: 1, 384>}]} {
    %c0 = arith.constant 0 : index
    %c0_0 = arith.constant 0 : index
    %0 = vector.load %arg1[%c0, %c0_0] : memref<1x40xf32, #tpu.memory_space<vmem>>, vector<1x40xf32>
    %c0_1 = arith.constant 0 : index
    %c0_2 = arith.constant 0 : index
    %1 = vector.load %arg2[%c0_1, %c0_2] : memref<40x384xf32, #tpu.memory_space<vmem>>, vector<40x384xf32>
    %cst = arith.constant dense<0.000000e+00> : vector<1x384xf32>
    %2 = tpu.matmul %0, %1, %cst {dimension_numbers = #tpu.dot_dimension_numbers<[1], [0], [0], [1], [0, 0, 1, 1], [], []>} : vector<1x40xf32>, vector<40x384xf32>, vector<1x384xf32> -> vector<1x384xf32>
    %c0_3 = arith.constant 0 : index
    %c0_4 = arith.constant 0 : index
    %3 = vector.load %arg3[%c0_3, %c0_4] : memref<1x384xf32, #tpu.memory_space<vmem>>, vector<1x384xf32>
    tpu.vector_store %arg3[%c0_3, %c0_4], %2 {strides = array<i32>} : memref<1x384xf32, #tpu.memory_space<vmem>>, vector<1x384xf32>,
    return
  }
  func.func @transform_0(%arg0: i32) -> (i32, i32) {
    %c0_i32 = arith.constant 0 : i32
    %c0_i32_0 = arith.constant 0 : i32
    %c0_i32_1 = arith.constant 0 : i32
    return %c0_i32, %c0_i32_0 : i32, i32
  }
  func.func @transform_1(%arg0: i32) -> (i32, i32) {
    %c0_i32 = arith.constant 0 : i32
    %c0_i32_0 = arith.constant 0 : i32
    return %c0_i32, %arg0 : i32, i32
  }
  func.func @transform_2(%arg0: i32) -> (i32, i32) {
    %c0_i32 = arith.constant 0 : i32
    %c0_i32_0 = arith.constant 0 : i32
    return %c0_i32, %arg0 : i32, i32
  }
}

</mosaic_0001>

<llo_original>
// kernel: hypernet_fc_forward.1
$region0: #{hypernet_fc_forward.1}
  #allocation0 [shape = 'u32[]', space=smem, size = 0x4, offset = 0x4, fixed_abs, tag = 'smem constant byte address 0x4 - core index']
  #allocation1 [shape = 'u32[144,128]{1,0:T(1,128)}', space=vmem, size = 0x12000, scoped, tag = 'internal scratch']
  %s0 = inlined_call_operand.vmem [shape: f32[1,40], index: 0, kind: input, shape index: {}]
  %s1 = inlined_call_operand.hbm [shape: f32[40,384], index: 1, kind: input, shape index: {}]
  %s2 = inlined_call_operand.vmem [shape: f32[1,384], index: 2, kind: output, shape index: {}]
  %s3 = sld [smem:[#allocation0]]
  $region22: #{hypernet_fc_forward.1} parent=0
    _
  %s5 = ssub.s32 1, %s3
  %s6 = scalar_select 0, %s5, %s3
  $region1: #{hypernet_fc_forward.1} parent=0
    #allocation2 [shape = 'u8[61440]{0}', space=vmem, size = 0xf000, scoped, tag = 'input window, operand 1, single buffered']
    #allocation3 [shape = 's32[1]{0}', space=sflag, size = 0x4, scoped, tag = 'scoped memory for hypernet_fc_forward.1']
    %7 = vsyncpa [#allocation3], 0
    // Predicated region
    $region2: #{hypernet_fc_forward.1} parent=1 // pred_check
      _
    $region3: #{hypernet_fc_forward.1} parent=1 // pred_check_branch
      %9 = sbr.rel (0) target = $region5
    $region4: #{hypernet_fc_forward.1} parent=1 // pred_region
      _
    $region5: #{hypernet_fc_forward.1} parent=1 // pred_fallthru
      _
    // Predicated region
    $region6: #{hypernet_fc_forward.1} parent=1 // pred_check
      _
    $region7: #{hypernet_fc_forward.1} parent=1 // pred_check_branch
      %11 = sbr.rel (0) target = $region9
    $region8: #{hypernet_fc_forward.1} parent=1 // pred_region
      %s13 = ssub.s32 1920, 1920
      %14 = vsyncadd [#allocation3], %s13
      %s15 = sshll.u32 [#allocation2], 4
      %s16 = int_to_ptr.vmem [resolvable:$true] %s15
      %21 = dma.hbm_to_vmem [thread:$0]  %s1, 1920, %s16, [#allocation3], 384, 384, 24
    $region9: #{hypernet_fc_forward.1} parent=1 // pred_fallthru
      _
    // Predicated region
    $region10: #{hypernet_fc_forward.1} parent=1 // pred_check
      _
    $region11: #{hypernet_fc_forward.1} parent=1 // pred_check_branch
      %23 = sbr.rel (0) target = $region13
    $region12: #{hypernet_fc_forward.1} parent=1 // pred_region
      %24 = dma.done [#allocation3], 1920
    $region13: #{hypernet_fc_forward.1} parent=1 // pred_fallthru
      _
    %v25 = vld [vmem:[%s0] sm:$0x1]
    %v26 = vld [vmem:[#allocation2] sm:$0xff]
    %v27 = vld [vmem:[#allocation2 + $0x8] sm:$0xff]
    %v28 = vld [vmem:[#allocation2 + $0x10] sm:$0xff]
    %v29 = vld [vmem:[#allocation2 + $0x18] sm:$0xff]
    %v30 = vld [vmem:[#allocation2 + $0x20] sm:$0xff]
    %v31 = vld [vmem:[#allocation2 + $0x28] sm:$0xff]
    %v32 = vld [vmem:[#allocation2 + $0x30] sm:$0xff]
    %v33 = vld [vmem:[#allocation2 + $0x38] sm:$0xff]
    %v34 = vld [vmem:[#allocation2 + $0x40] sm:$0xff]
    %v35 = vld [vmem:[#allocation2 + $0x48] sm:$0xff]
    %v36 = vld [vmem:[#allocation2 + $0x50] sm:$0xff]
    %v37 = vld [vmem:[#allocation2 + $0x58] sm:$0xff]
    %v38 = vld [vmem:[#allocation2 + $0x60] sm:$0xff]
    %v39 = vld [vmem:[#allocation2 + $0x68] sm:$0xff]
    %v40 = vld [vmem:[#allocation2 + $0x70] sm:$0xff]
    %vm41 = vcmask 326656
    %v43 = vsel %vm41, %v25, 0
    %45 = vmatprep.subr.mxu0 %v27
    %46 = vmatpush1.msra.mxu0 %v26
    %47 = vmatprep.subr.mxu0 %v30
    %48 = vmatpush1.msra.mxu0 %v29
    %49 = vmatprep.subr.mxu0 %v33
    %50 = vmatpush1.msra.mxu0 %v32
    %51 = vmatprep.subr.mxu0 %v36
    %52 = vmatpush1.msra.mxu0 %v35
    %53 = vmatprep.subr.mxu0 %v39
    %54 = vmatpush1.msra.mxu0 %v38
    %55 = vmatprep.subr.mxu0 0.0
    %56 = vmatpush1.msra.mxu0 0.0
    %57 = vmatprep.subr.mxu0 0.0
    %58 = vmatpush1.msra.mxu0 0.0
    %59 = vmatprep.subr.mxu0 0.0
    %60 = vmatpush1.msra.mxu0 0.0
    %61 = vmatprep.subr.mxu0 0.0
    %62 = vmatpush1.msra.mxu0 0.0
    %63 = vmatprep.subr.mxu0 0.0
    %64 = vmatpush1.msra.mxu0 0.0
    %65 = vmatprep.subr.mxu0 0.0
    %66 = vmatpush1.msra.mxu0 0.0
    %67 = vmatprep.subr.mxu0 0.0
    %68 = vmatpush1.msra.mxu0 0.0
    %69 = vmatprep.subr.mxu0 0.0
    %70 = vmatpush1.msra.mxu0 0.0
    %71 = vmatprep.subr.mxu0 0.0
    %72 = vmatpush1.msra.mxu0 0.0
    %73 = vmatprep.subr.mxu0 0.0
    %74 = vmatpush1.msra.mxu0 0.0
    %75 = vmatprep.subr.mxu0 0.0
    %76 = vmatpush1.msra.mxu0 0.0
    %77 = vmatprep.subr.mxu0 0.0
    %78 = vmatpush1.msra.mxu0 0.0
    %79 = vmatprep.subr.mxu0 0.0
    %80 = vmatpush1.msra.mxu0 0.0
    %81 = vmatprep.subr.mxu0 0.0
    %82 = vmatpush1.msra.mxu0 0.0
    %83 = vmatprep.subr.mxu0 0.0
    %84 = vmatpush1.msra.mxu0 0.0
    %85 = vmatprep.subr.mxu0 0.0
    %86 = vmatpush1.msra.mxu0 0.0
    %87 = vmatprep.subr.mxu0 0.0
    %88 = vmatpush1.msra.mxu0 0.0
    %89 = vmatprep.subr.mxu0 0.0
    %90 = vmatpush1.msra.mxu0 0.0
    %91 = vmatprep.subr.mxu0 0.0
    %92 = vmatpush1.msra.mxu0 0.0
    %93 = vmatprep.subr.mxu0 0.0
    %94 = vmatpush1.msra.mxu0 0.0
    %95 = vmatprep.subr.mxu0 0.0
    %96 = vmatpush1.msra.mxu0 0.0
    %97 = vmatprep.subr.mxu0 0.0
    %98 = vmatpush1.msra.mxu0 0.0
    %99 = vmatprep.subr.mxu0 0.0
    %100 = vmatpush1.msra.mxu0 0.0
    %101 = vmatprep.subr.mxu0 0.0
    %102 = vmatpush1.msra.mxu0 0.0
    %103 = vmatprep.subr.mxu0 0.0
    %104 = vmatpush1.msra.mxu0 0.0
    %105 = vmatprep.subr.mxu0 0.0
    %106 = vmatpush1.msra.mxu0 0.0
    %107 = vmatprep.subr.mxu0 0.0
    %108 = vmatpush1.msra.mxu0 0.0
    %109 = vmatprep.mubr.f32.mxu0 0.0
    %110 = vmatmul.mubr.f32.gmra.mrb[0].mxu0 %v43
    %v111 = vpop.f32.mrb[0].mxu0
    %v112 = vadd.f32 0.0, %v111
    %v113 = vpop.f32.mrb[0].mxu0
    %v114 = vadd.f32 0.0, %v113
    %115 = vdwg.mxu0
    %116 = vmatprep.subr.mxu0 0.0
    %117 = vmatpush1.msra.mxu0 %v28
    %118 = vmatprep.subr.mxu0 0.0
    %119 = vmatpush1.msra.mxu0 %v31
    %120 = vmatprep.subr.mxu0 0.0
    %121 = vmatpush1.msra.mxu0 %v34
    %122 = vmatprep.subr.mxu0 0.0
    %123 = vmatpush1.msra.mxu0 %v37
    %124 = vmatprep.subr.mxu0 0.0
    %125 = vmatpush1.msra.mxu0 %v40
    %126 = vmatprep.subr.mxu0 0.0
    %127 = vmatpush1.msra.mxu0 0.0
    %128 = vmatprep.subr.mxu0 0.0
    %129 = vmatpush1.msra.mxu0 0.0
    %130 = vmatprep.subr.mxu0 0.0
    %131 = vmatpush1.msra.mxu0 0.0
    %132 = vmatprep.subr.mxu0 0.0
    %133 = vmatpush1.msra.mxu0 0.0
    %134 = vmatprep.subr.mxu0 0.0
    %135 = vmatpush1.msra.mxu0 0.0
    %136 = vmatprep.subr.mxu0 0.0
    %137 = vmatpush1.msra.mxu0 0.0
    %138 = vmatprep.subr.mxu0 0.0
    %139 = vmatpush1.msra.mxu0 0.0
    %140 = vmatprep.subr.mxu0 0.0
    %141 = vmatpush1.msra.mxu0 0.0
    %142 = vmatprep.subr.mxu0 0.0
    %143 = vmatpush1.msra.mxu0 0.0
    %144 = vmatprep.subr.mxu0 0.0
    %145 = vmatpush1.msra.mxu0 0.0
    %146 = vmatprep.subr.mxu0 0.0
    %147 = vmatpush1.msra.mxu0 0.0
    %148 = vmatprep.subr.mxu0 0.0
    %149 = vmatpush1.msra.mxu0 0.0
    %150 = vmatprep.subr.mxu0 0.0
    %151 = vmatpush1.msra.mxu0 0.0
    %152 = vmatprep.subr.mxu0 0.0
    %153 = vmatpush1.msra.mxu0 0.0
    %154 = vmatprep.subr.mxu0 0.0
    %155 = vmatpush1.msra.mxu0 0.0
    %156 = vmatprep.subr.mxu0 0.0
    %157 = vmatpush1.msra.mxu0 0.0
    %158 = vmatprep.subr.mxu0 0.0
    %159 = vmatpush1.msra.mxu0 0.0
    %160 = vmatprep.subr.mxu0 0.0
    %161 = vmatpush1.msra.mxu0 0.0
    %162 = vmatprep.subr.mxu0 0.0
    %163 = vmatpush1.msra.mxu0 0.0
    %164 = vmatprep.subr.mxu0 0.0
    %165 = vmatpush1.msra.mxu0 0.0
    %166 = vmatprep.subr.mxu0 0.0
    %167 = vmatpush1.msra.mxu0 0.0
    %168 = vmatprep.subr.mxu0 0.0
    %169 = vmatpush1.msra.mxu0 0.0
    %170 = vmatprep.subr.mxu0 0.0
    %171 = vmatpush1.msra.mxu0 0.0
    %172 = vmatprep.subr.mxu0 0.0
    %173 = vmatpush1.msra.mxu0 0.0
    %174 = vmatprep.subr.mxu0 0.0
    %175 = vmatpush1.msra.mxu0 0.0
    %176 = vmatprep.subr.mxu0 0.0
    %177 = vmatpush1.msra.mxu0 0.0
    %178 = vmatprep.subr.mxu0 0.0
    %179 = vmatpush1.msra.mxu0 0.0
    %180 = vmatprep.mubr.f32.mxu0 0.0
    %181 = vmatmul.mubr.f32.gmra.mrb[0].mxu0 %v43
    %v182 = vpop.f32.mrb[0].mxu0
    %v183 = vadd.f32 0.0, %v182
    %v184 = vpop.f32.mrb[0].mxu0
    %185 = vdwg.mxu0
    %v189 = vcombine.low %v112, %v114
    %v191 = vunpack.c.l.s4 1966171168
    %v192 = vunpack.c.0.s8 %v191
    %v193 = vlaneseq
    %v194 = vshrl.u32 %v193, 7
    %v195 = vsub.s32 %v192, %v194
    %v196 = vrot.slane %v189, %v195
    %v198 = vunpack.c.l.s4 1966171168
    %v199 = vunpack.c.0.s8 %v198
    %v200 = vlaneseq
    %v201 = vshrl.u32 %v200, 7
    %v202 = vsub.s32 %v199, %v201
    %v203 = vrot.slane %v183, %v202
    %v204 = vcombine.low %v196, %v203
    %v206 = vunpack.c.l.s4 1966171168
    %v207 = vunpack.c.0.s8 %v206
    %v208 = vlaneseq
    %v209 = vshrl.u32 %v208, 7
    %v210 = vsub.s32 %v207, %v209
    %v211 = vrot.slane %v204, %v210
    %v213 = vlaneseq
    %vm214 = vcmp.ge.s32.totalorder %v213, 0
    %vm215 = vcmp.lt.s32.totalorder %v213, 384
    %vm216 = vmand %vm214, %vm215
    %217 = vst.msk [vmem:[%s2] sm:$0x7] %vm216, %v211
    // Predicated region
    $region14: #{hypernet_fc_forward.1} parent=1 // pred_check
      _
    $region15: #{hypernet_fc_forward.1} parent=1 // pred_check_branch
      %219 = sbr.rel (0) target = $region17
    $region16: #{hypernet_fc_forward.1} parent=1 // pred_region
      _
    $region17: #{hypernet_fc_forward.1} parent=1 // pred_fallthru
      _
    // Predicated region
    $region18: #{hypernet_fc_forward.1} parent=1 // pred_check
      _
    $region19: #{hypernet_fc_forward.1} parent=1 // pred_check_branch
      %221 = sbr.rel (0) target = $region21
    $region20: #{hypernet_fc_forward.1} parent=1 // pred_region
      _
    $region21: #{hypernet_fc_forward.1} parent=1 // pred_fallthru
      _
    %222 = vsyncpa [#allocation3], 1

</llo_original>
